<compile_context>
chip_gen: v7x
topology: tpu7x:2x2x1
jax: 0.10.0
libtpu: 0.0.40
codegen_flags: <defaults>
</compile_context>

<pallas_src>
import functools

import numpy as np
import jax
import jax.numpy as jnp
from jax.experimental import pallas as pl
from jax.experimental.pallas import tpu as pltpu


# ----------------------------------------------------------------------------
# Mask construction (identical to the PyTorch helper, plain numpy glue)
# ----------------------------------------------------------------------------
def triu_conv_mask(n_in, n_out, kernel_size, diagonal_zeros):
    assert n_out % n_in == 0 or n_in % n_out == 0, '%d - %d' % (n_in, n_out)
    l = (kernel_size[0] - 1) // 2
    m = (kernel_size[1] - 1) // 2
    mask = np.ones((n_out, n_in, kernel_size[0], kernel_size[1]), dtype=np.float32)
    mask[:, :, :l, :] = 0
    mask[:, :, l, :m] = 0
    if n_out >= n_in:
        k = n_out // n_in
        for i in range(n_in):
            mask[i * k:(i + 1) * k, i + 1:, l, m] = 0
            if diagonal_zeros:
                mask[i * k:(i + 1) * k, i:i + 1, l, m] = 0
    else:
        k = n_in // n_out
        for i in range(n_out):
            mask[i:i + 1, (i + 1) * k:, l, m] = 0
            if diagonal_zeros:
                mask[i:i + 1, i * k:(i + 1) * k, l, m] = 0
    return mask


# ----------------------------------------------------------------------------
# Pallas kernel: one batch item per grid step, unrolled live-tap contraction
# ----------------------------------------------------------------------------
def _masked_conv_kernel(x_ref, w_ref, b_ref, o_ref, *, tap_offsets, l_out):
    # x_ref: (Cin, Lp)          flattened zero-padded input plane (one batch item)
    # w_ref: (Klive, Cout, Cin) masked weights of the live taps (VMEM resident)
    # b_ref: (Cout, 1)
    # o_ref: (Cout, L_out)      "wide" output rows; junk columns cropped by wrapper
    acc = None
    for j, off in enumerate(tap_offsets):           # static unrolled loop, Klive taps
        window = x_ref[:, off:off + l_out]          # (Cin, L_out) static lane slice
        part = jnp.dot(w_ref[j], window, preferred_element_type=jnp.float32)
        acc = part if acc is None else acc + part
    o_ref[...] = (acc + b_ref[...]).astype(o_ref.dtype)


def masked_conv2d(x_nchw, weight, bias, mask_np, padding):
    """Equivalent of F.conv2d(x, mask * weight, bias, padding=padding), stride 1."""
    N, Cin, H, W = x_nchw.shape
    Cout, _, KH, KW = weight.shape
    ph, pw = padding
    Hp, Wp = H + 2 * ph, W + 2 * pw
    Ho, Wo = Hp - KH + 1, Wp - KW + 1
    L_out = Ho * Wp                 # output row length incl. (Wp - Wo) junk cols
    Lp = (Hp + 1) * Wp              # one extra zero row keeps all tap windows in-bounds

    # --- static tap pruning from the (numpy) mask ---------------------------
    mask_np = np.asarray(mask_np)
    live = [(kh, kw) for kh in range(KH) for kw in range(KW)
            if np.any(mask_np[:, :, kh, kw] != 0.0)]
    assert live, "mask zeroes out every tap"
    tap_offsets = tuple(kh * Wp + kw for kh, kw in live)

    # --- tiny glue: masked weight slabs, bias, flattened padded input -------
    w_masked = weight * jnp.asarray(mask_np)                       # (Cout, Cin, KH, KW)
    w_taps = jnp.stack([w_masked[:, :, kh, kw] for kh, kw in live], axis=0)  # (Klive,Cout,Cin)
    if bias is None:
        bias = jnp.zeros((Cout,), dtype=jnp.float32)
    b2d = bias.reshape(Cout, 1).astype(jnp.float32)

    xp = jnp.pad(x_nchw, ((0, 0), (0, 0), (ph, ph + 1), (pw, pw)))  # (N, Cin, Hp+1, Wp)
    x_flat = xp.reshape(N, Cin, Lp)                                 # read once per batch item

    kernel = functools.partial(_masked_conv_kernel,
                               tap_offsets=tap_offsets, l_out=L_out)

    out_wide = pl.pallas_call(
        kernel,
        out_shape=jax.ShapeDtypeStruct((N, Cout, L_out), x_nchw.dtype),
        grid_spec=pltpu.PrefetchScalarGridSpec(
            num_scalar_prefetch=0,
            grid=(N,),
            in_specs=[
                pl.BlockSpec((None, Cin, Lp), lambda n: (n, 0, 0)),
                pl.BlockSpec((len(live), Cout, Cin), lambda n: (0, 0, 0)),
                pl.BlockSpec((Cout, 1), lambda n: (0, 0)),
            ],
            out_specs=pl.BlockSpec((None, Cout, L_out), lambda n: (n, 0, 0)),
        ),
        compiler_params=pltpu.CompilerParams(
            dimension_semantics=("parallel",)),
    )(x_flat, w_taps, b2d)

    # (N, Cout, Ho*Wp) -> crop junk columns -> (N, Cout, Ho, Wo)  (already NCHW)
    return out_wide.reshape(N, Cout, Ho, Wp)[:, :, :, :Wo]


# ----------------------------------------------------------------------------
# Demo / self-check
# ----------------------------------------------------------------------------
if __name__ == "__main__":
    # MaskedConv2d(in_features=4, out_features=8, size_kernel=(3,3),
    #              diagonal_zeros=False, bias=True)
    in_features, out_features = 4, 8
    size_kernel = (3, 3)
    diagonal_zeros = False
    padding = ((size_kernel[0] - 1) // 2, (size_kernel[1] - 1) // 2)

    N, H, W = 2, 16, 16

    key = jax.random.PRNGKey(0)
    kx, kw, kb = jax.random.split(key, 3)

    x = jax.random.normal(kx, (N, in_features, H, W), dtype=jnp.float32)

    # kaiming_normal_-style init: std = sqrt(2 / fan_in), fan_in = Cin*KH*KW
    fan_in = in_features * size_kernel[0] * size_kernel[1]
    weight = jax.random.normal(
        kw, (out_features, in_features, *size_kernel), dtype=jnp.float32
    ) * jnp.sqrt(2.0 / fan_in)
    # module zeros the bias; use a small deterministic nonzero bias to exercise the path
    bias = 0.1 * jax.random.normal(kb, (out_features,), dtype=jnp.float32)

    mask_np = triu_conv_mask(in_features, out_features, size_kernel, diagonal_zeros)

    out = masked_conv2d(x, weight, bias, mask_np, padding)
    out = jax.block_until_ready(out)

    # reference: plain XLA conv with the masked weights
    ref = jax.lax.conv_general_dilated(
        x, weight * jnp.asarray(mask_np), window_strides=(1, 1),
        padding=[(padding[0], padding[0]), (padding[1], padding[1])],
        dimension_numbers=("NCHW", "OIHW", "NCHW"),
    ) + bias.reshape(1, out_features, 1, 1)

    assert out.shape == (N, out_features, H, W), out.shape
    np.testing.assert_allclose(np.asarray(out), np.asarray(ref), rtol=1e-5, atol=1e-5)

    print("KERNEL_OK")
</pallas_src>

<mosaic_0001>
module attributes {stable_mosaic.version = 11 : i64} {
  func.func @_masked_conv_kernel(%arg0: i32, %arg1: memref<1x4x342xf32, #tpu.memory_space<vmem>>, %arg2: memref<5x8x4xf32, #tpu.memory_space<vmem>>, %arg3: memref<8x1xf32, #tpu.memory_space<vmem>>, %arg4: memref<1x8x288xf32, #tpu.memory_space<vmem>>) attributes {dimension_semantics = [#tpu.dimension_semantics<parallel>], iteration_bounds = array<i64: 2>, scalar_prefetch = 0 : i64, scratch_operands = 0 : i64, tpu.core_type = #tpu.core_type<tc>, window_params = [{transform_indices = @transform_0, window_bounds = array<i64: 1, 4, 342>}, {pipeline_mode = #tpu.pipeline_mode<synchronous>, transform_indices = @transform_1, window_bounds = array<i64: 5, 8, 4>}, {pipeline_mode = #tpu.pipeline_mode<synchronous>, transform_indices = @transform_2, window_bounds = array<i64: 8, 1>}, {transform_indices = @transform_3, window_bounds = array<i64: 1, 8, 288>}]} {
    %c0 = arith.constant 0 : index
    %c0_0 = arith.constant 0 : index
    %c19 = arith.constant 19 : index
    %0 = vector.load %arg1[%c0, %c0_0, %c19] : memref<1x4x342xf32, #tpu.memory_space<vmem>>, vector<1x4x288xf32>
    %1 = vector.shape_cast %0 : vector<1x4x288xf32> to vector<4x288xf32>
    %c0_1 = arith.constant 0 : index
    %c0_2 = arith.constant 0 : index
    %c0_3 = arith.constant 0 : index
    %2 = vector.load %arg2[%c0_1, %c0_2, %c0_3] : memref<5x8x4xf32, #tpu.memory_space<vmem>>, vector<1x8x4xf32>
    %3 = vector.shape_cast %2 : vector<1x8x4xf32> to vector<8x4xf32>
    %cst = arith.constant dense<0.000000e+00> : vector<8x288xf32>
    %4 = tpu.matmul %3, %1, %cst {dimension_numbers = #tpu.dot_dimension_numbers<[1], [0], [0], [1], [0, 0, 1, 1], [], []>} : vector<8x4xf32>, vector<4x288xf32>, vector<8x288xf32> -> vector<8x288xf32>
    %c0_4 = arith.constant 0 : index
    %c0_5 = arith.constant 0 : index
    %c20 = arith.constant 20 : index
    %5 = vector.load %arg1[%c0_4, %c0_5, %c20] : memref<1x4x342xf32, #tpu.memory_space<vmem>>, vector<1x4x288xf32>
    %6 = vector.shape_cast %5 : vector<1x4x288xf32> to vector<4x288xf32>
    %c1 = arith.constant 1 : index
    %c0_6 = arith.constant 0 : index
    %c0_7 = arith.constant 0 : index
    %7 = vector.load %arg2[%c1, %c0_6, %c0_7] : memref<5x8x4xf32, #tpu.memory_space<vmem>>, vector<1x8x4xf32>
    %8 = vector.shape_cast %7 : vector<1x8x4xf32> to vector<8x4xf32>
    %cst_8 = arith.constant dense<0.000000e+00> : vector<8x288xf32>
    %9 = tpu.matmul %8, %6, %cst_8 {dimension_numbers = #tpu.dot_dimension_numbers<[1], [0], [0], [1], [0, 0, 1, 1], [], []>} : vector<8x4xf32>, vector<4x288xf32>, vector<8x288xf32> -> vector<8x288xf32>
    %10 = arith.addf %4, %9 : vector<8x288xf32>
    %c0_9 = arith.constant 0 : index
    %c0_10 = arith.constant 0 : index
    %c36 = arith.constant 36 : index
    %11 = vector.load %arg1[%c0_9, %c0_10, %c36] : memref<1x4x342xf32, #tpu.memory_space<vmem>>, vector<1x4x288xf32>
    %12 = vector.shape_cast %11 : vector<1x4x288xf32> to vector<4x288xf32>
    %c2 = arith.constant 2 : index
    %c0_11 = arith.constant 0 : index
    %c0_12 = arith.constant 0 : index
    %13 = vector.load %arg2[%c2, %c0_11, %c0_12] : memref<5x8x4xf32, #tpu.memory_space<vmem>>, vector<1x8x4xf32>
    %14 = vector.shape_cast %13 : vector<1x8x4xf32> to vector<8x4xf32>
    %cst_13 = arith.constant dense<0.000000e+00> : vector<8x288xf32>
    %15 = tpu.matmul %14, %12, %cst_13 {dimension_numbers = #tpu.dot_dimension_numbers<[1], [0], [0], [1], [0, 0, 1, 1], [], []>} : vector<8x4xf32>, vector<4x288xf32>, vector<8x288xf32> -> vector<8x288xf32>
    %16 = arith.addf %10, %15 : vector<8x288xf32>
    %c0_14 = arith.constant 0 : index
    %c0_15 = arith.constant 0 : index
    %c37 = arith.constant 37 : index
    %17 = vector.load %arg1[%c0_14, %c0_15, %c37] : memref<1x4x342xf32, #tpu.memory_space<vmem>>, vector<1x4x288xf32>
    %18 = vector.shape_cast %17 : vector<1x4x288xf32> to vector<4x288xf32>
    %c3 = arith.constant 3 : index
    %c0_16 = arith.constant 0 : index
    %c0_17 = arith.constant 0 : index
    %19 = vector.load %arg2[%c3, %c0_16, %c0_17] : memref<5x8x4xf32, #tpu.memory_space<vmem>>, vector<1x8x4xf32>
    %20 = vector.shape_cast %19 : vector<1x8x4xf32> to vector<8x4xf32>
    %cst_18 = arith.constant dense<0.000000e+00> : vector<8x288xf32>
    %21 = tpu.matmul %20, %18, %cst_18 {dimension_numbers = #tpu.dot_dimension_numbers<[1], [0], [0], [1], [0, 0, 1, 1], [], []>} : vector<8x4xf32>, vector<4x288xf32>, vector<8x288xf32> -> vector<8x288xf32>
    %22 = arith.addf %16, %21 : vector<8x288xf32>
    %c0_19 = arith.constant 0 : index
    %c0_20 = arith.constant 0 : index
    %c38 = arith.constant 38 : index
    %23 = vector.load %arg1[%c0_19, %c0_20, %c38] : memref<1x4x342xf32, #tpu.memory_space<vmem>>, vector<1x4x288xf32>
    %24 = vector.shape_cast %23 : vector<1x4x288xf32> to vector<4x288xf32>
    %c4 = arith.constant 4 : index
    %c0_21 = arith.constant 0 : index
    %c0_22 = arith.constant 0 : index
    %25 = vector.load %arg2[%c4, %c0_21, %c0_22] : memref<5x8x4xf32, #tpu.memory_space<vmem>>, vector<1x8x4xf32>
    %26 = vector.shape_cast %25 : vector<1x8x4xf32> to vector<8x4xf32>
    %cst_23 = arith.constant dense<0.000000e+00> : vector<8x288xf32>
    %27 = tpu.matmul %26, %24, %cst_23 {dimension_numbers = #tpu.dot_dimension_numbers<[1], [0], [0], [1], [0, 0, 1, 1], [], []>} : vector<8x4xf32>, vector<4x288xf32>, vector<8x288xf32> -> vector<8x288xf32>
    %28 = arith.addf %22, %27 : vector<8x288xf32>
    %c0_24 = arith.constant 0 : index
    %c0_25 = arith.constant 0 : index
    %29 = vector.load %arg3[%c0_24, %c0_25] : memref<8x1xf32, #tpu.memory_space<vmem>>, vector<8x1xf32>
    %30 = vector.broadcast %29 : vector<8x1xf32> to vector<8x288xf32>
    %31 = arith.addf %28, %30 : vector<8x288xf32>
    %c0_26 = arith.constant 0 : index
    %c0_27 = arith.constant 0 : index
    %c0_28 = arith.constant 0 : index
    %32 = vector.load %arg4[%c0_26, %c0_27, %c0_28] : memref<1x8x288xf32, #tpu.memory_space<vmem>>, vector<1x8x288xf32>
    %33 = vector.shape_cast %32 : vector<1x8x288xf32> to vector<8x288xf32>
    %34 = vector.shape_cast %31 : vector<8x288xf32> to vector<1x8x288xf32>
    tpu.vector_store %arg4[%c0_26, %c0_27, %c0_28], %34 {strides = array<i32>} : memref<1x8x288xf32, #tpu.memory_space<vmem>>, vector<1x8x288xf32>,
    return
  }
  func.func @transform_0(%arg0: i32) -> (i32, i32, i32) {
    %c0_i32 = arith.constant 0 : i32
    %c0_i32_0 = arith.constant 0 : i32
    %c0_i32_1 = arith.constant 0 : i32
    return %arg0, %c0_i32, %c0_i32_0 : i32, i32, i32
  }
  func.func @transform_1(%arg0: i32) -> (i32, i32, i32) {
    %c0_i32 = arith.constant 0 : i32
    %c0_i32_0 = arith.constant 0 : i32
    %c0_i32_1 = arith.constant 0 : i32
    %c0_i32_2 = arith.constant 0 : i32
    return %c0_i32, %c0_i32_0, %c0_i32_1 : i32, i32, i32
  }
  func.func @transform_2(%arg0: i32) -> (i32, i32) {
    %c0_i32 = arith.constant 0 : i32
    %c0_i32_0 = arith.constant 0 : i32
    %c0_i32_1 = arith.constant 0 : i32
    return %c0_i32, %c0_i32_0 : i32, i32
  }
  func.func @transform_3(%arg0: i32) -> (i32, i32, i32) {
    %c0_i32 = arith.constant 0 : i32
    %c0_i32_0 = arith.constant 0 : i32
    %c0_i32_1 = arith.constant 0 : i32
    return %arg0, %c0_i32, %c0_i32_0 : i32, i32, i32
  }
}

</mosaic_0001>

<llo_original>
// kernel: tpu_custom_call.1
$region0: #{tpu_custom_call.1}
  #allocation0 [shape = 'u32[]', space=smem, size = 0x4, offset = 0x4, fixed_abs, tag = 'smem constant byte address 0x4 - core index']
  #allocation1 [shape = 'u32[144,128]{1,0:T(1,128)}', space=vmem, size = 0x12000, scoped, tag = 'internal scratch']
  %s0 = inlined_call_operand.vmem [shape: f32[2,4,342], index: 0, kind: input, shape index: {}]
  %s1 = inlined_call_operand.vmem [shape: f32[5,8,4], index: 1, kind: input, shape index: {}]
  %s2 = inlined_call_operand.vmem [shape: f32[8,1], index: 2, kind: input, shape index: {}]
  %s3 = inlined_call_operand.hbm [shape: f32[2,8,288], index: 3, kind: output, shape index: {}]
  %s4 = sld [smem:[#allocation0]]
  $region45: #{tpu_custom_call.1} parent=0
    _
  %s6 = ssub.s32 1, %s4
  %s7 = scalar_select 0, %s6, %s4
  $region1: #{tpu_custom_call.1} parent=0
    #allocation2 [shape = 'u8[24576]{0}', space=vmem, size = 0x6000, scoped, tag = 'output window, operand 0']
    #allocation3 [shape = 's32[2]{0}', space=sflag, size = 0x8, scoped, tag = 'scoped memory for tpu_custom_call.1']
    %8 = vsyncpa [#allocation3], 0
    %s9 = scalar_lea.sflag [#allocation3], 1
    %10 = vsyncpa %s9, 0
    loop: start=0, step=1, limit=4
    $region2: #{tpu_custom_call.1} parent=1 // loop_pre_header
      _
    $region3: #{tpu_custom_call.1} parent=1 // loop_header
      %s12 = sphi 0, %s16
      %p13 = scmp.ge.s32.totalorder %s12, 4
      %s22 = sphi 0, %s24
      %s25 = sphi 0, %s22
      %s26 = sphi 0, %s25
      %s42 = sphi 0, %s26
      %s46 = sphi 0, %s46
      %s48 = sphi 0, %s46
      %s49 = sphi 0, %s48
      %s63 = sphi 0, %s49
      %s67 = sphi 0, %s67
      %s69 = sphi 0, %s67
      %s70 = sphi 0, %s69
      %s84 = sphi 0, %s70
      %s90 = sphi 0, %s92
      %s93 = sphi 0, %s90
      %s94 = sphi 0, %s93
      %s110 = sphi 0, %s94
    $region4: #{tpu_custom_call.1} parent=1 // loop_header_branch
      %15 = sbr.rel (%p13) target = $region8
    $region5: #{tpu_custom_call.1} parent=1 // loop_body
      %s17 = ssub.s32 %s12, 1
      %s18 = ssub.s32 %s12, 2
      %s19 = sadd.s32 %s12, 1
      %s20 = ssub.s32 %s12, %s19
      %p21 = scmp.eq.s32.totalorder %s20, 0
      %s23 = sadd.s32 %s22, 1
      %s24 = scalar_select %p21, %s22, %s23
      %p27 = pneg %p21
      %p28 = scmp.eq.s32.totalorder %s12, 1
      %p29 = por %p27, %p28
      %p30 = scmp.ne.s32.totalorder %s22, %s25
      %p31 = scmp.eq.s32.totalorder %s12, 0
      %p32 = por %p30, %p31
      %p33 = scmp.ne.s32.totalorder %s22, %s25
      %p34 = scmp.eq.s32.totalorder %s17, 1
      %p35 = por %p33, %p34
      %p36 = scmp.ne.s32.totalorder %s25, %s26
      %p37 = scmp.eq.s32.totalorder %s17, 0
      %p38 = por %p36, %p37
      %p39 = scmp.ne.s32.totalorder %s25, %s26
      %p40 = scmp.eq.s32.totalorder %s18, 1
      %p41 = por %p39, %p40
      %p43 = scmp.ne.s32.totalorder %s26, %s42
      %p44 = scmp.eq.s32.totalorder %s18, 0
      %p45 = por %p43, %p44
      %s47 = sadd.s32 %s46, 1
      %p50 = scmp.eq.s32.totalorder %s12, 1
      %p51 = scmp.ne.s32.totalorder %s46, %s48
      %p52 = scmp.eq.s32.totalorder %s12, 0
      %p53 = por %p51, %p52
      %p54 = scmp.ne.s32.totalorder %s46, %s48
      %p55 = scmp.eq.s32.totalorder %s17, 1
      %p56 = por %p54, %p55
      %p57 = scmp.ne.s32.totalorder %s48, %s49
      %p58 = scmp.eq.s32.totalorder %s17, 0
      %p59 = por %p57, %p58
      %p60 = scmp.ne.s32.totalorder %s48, %s49
      %p61 = scmp.eq.s32.totalorder %s18, 1
      %p62 = por %p60, %p61
      %p64 = scmp.ne.s32.totalorder %s49, %s63
      %p65 = scmp.eq.s32.totalorder %s18, 0
      %p66 = por %p64, %p65
      %s68 = sadd.s32 %s67, 1
      %p71 = scmp.eq.s32.totalorder %s12, 1
      %p72 = scmp.ne.s32.totalorder %s67, %s69
      %p73 = scmp.eq.s32.totalorder %s12, 0
      %p74 = por %p72, %p73
      %p75 = scmp.ne.s32.totalorder %s67, %s69
      %p76 = scmp.eq.s32.totalorder %s17, 1
      %p77 = por %p75, %p76
      %p78 = scmp.ne.s32.totalorder %s69, %s70
      %p79 = scmp.eq.s32.totalorder %s17, 0
      %p80 = por %p78, %p79
      %p81 = scmp.ne.s32.totalorder %s69, %s70
      %p82 = scmp.eq.s32.totalorder %s18, 1
      %p83 = por %p81, %p82
      %p85 = scmp.ne.s32.totalorder %s70, %s84
      %p86 = scmp.eq.s32.totalorder %s18, 0
      %p87 = por %p85, %p86
      %s88 = ssub.s32 %s12, %s19
      %p89 = scmp.eq.s32.totalorder %s88, 0
      %s91 = sadd.s32 %s90, 1
      %s92 = scalar_select %p89, %s90, %s91
      %p95 = pneg %p89
      %p96 = scmp.eq.s32.totalorder %s12, 1
      %p97 = por %p95, %p96
      %p98 = scmp.ne.s32.totalorder %s90, %s93
      %p99 = scmp.eq.s32.totalorder %s12, 0
      %p100 = por %p98, %p99
      %p101 = scmp.ne.s32.totalorder %s90, %s93
      %p102 = scmp.eq.s32.totalorder %s17, 1
      %p103 = por %p101, %p102
      %p104 = scmp.ne.s32.totalorder %s93, %s94
      %p105 = scmp.eq.s32.totalorder %s17, 0
      %p106 = por %p104, %p105
      %p107 = scmp.ne.s32.totalorder %s93, %s94
      %p108 = scmp.eq.s32.totalorder %s18, 1
      %p109 = por %p107, %p108
      %p111 = scmp.ne.s32.totalorder %s94, %s110
      %p112 = scmp.eq.s32.totalorder %s18, 0
      %p113 = por %p111, %p112
      %p114 = scmp.le.s32.totalorder 1, %s12
      %p115 = scmp.lt.s32.totalorder %s12, 3
      %p116 = pnand %p114, %p115
      %p117 = pneg %p116
      // Predicated region
      $region9: #{tpu_custom_call.1} parent=5 // pred_check
        _
      $region10: #{tpu_custom_call.1} parent=5 // pred_check_branch
        %119 = sbr.rel (%p116) target = $region12
      $region11: #{tpu_custom_call.1} parent=5 // pred_region
        %s120 = ssub.s32 %s12, 1
        // Predicated region
        $region13: #{tpu_custom_call.1} parent=11 // pred_check
          %p121 = pneg %p59
        $region14: #{tpu_custom_call.1} parent=11 // pred_check_branch
          %123 = sbr.rel (%p121) target = $region16
        $region15: #{tpu_custom_call.1} parent=11 // pred_region
          _
        $region16: #{tpu_custom_call.1} parent=11 // pred_fallthru
          _
        // Predicated region
        $region17: #{tpu_custom_call.1} parent=11 // pred_check
          %p124 = pneg %p80
        $region18: #{tpu_custom_call.1} parent=11 // pred_check_branch
          %126 = sbr.rel (%p124) target = $region20
        $region19: #{tpu_custom_call.1} parent=11 // pred_region
          _
        $region20: #{tpu_custom_call.1} parent=11 // pred_fallthru
          _
      $region12: #{tpu_custom_call.1} parent=5 // pred_fallthru
        _
      %p127 = scmp.lt.s32.totalorder %s12, 2
      // Predicated region
      $region21: #{tpu_custom_call.1} parent=5 // pred_check
        %p128 = pneg %p127
      $region22: #{tpu_custom_call.1} parent=5 // pred_check_branch
        %130 = sbr.rel (%p128) target = $region24
      $region23: #{tpu_custom_call.1} parent=5 // pred_region
        // Predicated region
        $region25: #{tpu_custom_call.1} parent=23 // pred_check
          %p131 = pneg %p32
        $region26: #{tpu_custom_call.1} parent=23 // pred_check_branch
          %133 = sbr.rel (%p131) target = $region28
        $region27: #{tpu_custom_call.1} parent=23 // pred_region
          %p134 = scmp.lt.s32.totalorder %s12, 1
          %s135 = scalar_select %p134, %s12, 1
          %s136 = smul.addr %s135, 3
          %s137 = smul.addr %s136, 4
          %s138 = scalar_lea.vmem %s0, %s137
        $region28: #{tpu_custom_call.1} parent=23 // pred_fallthru
          _
      $region24: #{tpu_custom_call.1} parent=5 // pred_fallthru
        _
      %p139 = scmp.le.s32.totalorder 1, %s12
      %p140 = scmp.lt.s32.totalorder %s12, 3
      %p141 = pnand %p139, %p140
      %p142 = pneg %p141
      // Predicated region
      $region29: #{tpu_custom_call.1} parent=5 // pred_check
        _
      $region30: #{tpu_custom_call.1} parent=5 // pred_check_branch
        %144 = sbr.rel (%p141) target = $region32
      $region31: #{tpu_custom_call.1} parent=5 // pred_region
        %s145 = ssub.s32 %s12, 1
        %p146 = scmp.lt.s32.totalorder %s17, 1
        %s147 = scalar_select %p146, %s17, 1
        %s148 = smul.addr %s147, 3
        %s149 = smul.addr %s148, 4
        %s150 = scalar_lea.vmem %s0, %s149
        %p151 = pneg %p38
        %p152 = pneg %p35
        %p153 = pneg %p59
        %p154 = pneg %p56
        %p155 = pneg %p80
        %p156 = pneg %p77
        %p157 = pneg %p106
        %p158 = pneg %p103
        %s159 = sand.u32 %s93, 1
        %s160 = scalar_lea.sflag [#allocation3], %s159
        %s161 = sand.u32 %s93, 1
        %s162 = smul.addr %s161, 24
        %s163 = scalar_lea.vmem [#allocation2], %s162
        %p164 = scmp.lt.s32.totalorder %s17, 1
        %s165 = scalar_select %p164, %s17, 1
        %s166 = smul.addr %s165, 3
        %s167 = smul.addr %s166, 4
        %s168 = scalar_lea.vmem %s0, %s167
        %v169 = vld [vmem:[%s168] sm:$0xff]
        %v170 = vld [vmem:[%s168 + $0x8] sm:$0xf]
        %v171 = vld [vmem:[%s1] sm:$0xff]
        %s172 = scalar_lea.vmem %s1, 8
        %v173 = vld [vmem:[%s172] sm:$0xff]
        %v176 = vcombine.high %v169, %v169
        %177 = vrot.lane.b32.xlu0 %v169, 108
        %v178 = vpop.permute.xlu0 %177
        %179 = vrot.lane.b32.xlu0 %v176, 108
        %v180 = vpop.permute.xlu0 %179
        %181 = vrot.lane.b32.xlu0 %v170, 108
        %v182 = vpop.permute.xlu0 %181
        %vm183 = vcmask 883712
        %v184 = vsel %vm183, %v178, %v180
        %v185 = vsel %vm183, %v180, %v182
        %vm186 = vcmask 31744
        %v188 = vsel %vm186, %v173, 0
        %vm190 = vcmask 1043456
        %v191 = vsel %vm190, %v184, 0
        %v193 = vsel %vm190, %v185, 0
        %v195 = vsel %vm190, %v182, 0
        %197 = vmatprep.subr.mxu0 %v193
        %198 = vmatpush1.msra.mxu0 %v191
        %199 = vmatprep.subr.mxu0 0.0
        %200 = vmatpush1.msra.mxu0 0.0
        %201 = vmatprep.subr.mxu0 0.0
        %202 = vmatpush1.msra.mxu0 0.0
        %203 = vmatprep.subr.mxu0 0.0
        %204 = vmatpush1.msra.mxu0 0.0
        %205 = vmatprep.subr.mxu0 0.0
        %206 = vmatpush1.msra.mxu0 0.0
        %207 = vmatprep.subr.mxu0 0.0
        %208 = vmatpush1.msra.mxu0 0.0
        %209 = vmatprep.subr.mxu0 0.0
        %210 = vmatpush1.msra.mxu0 0.0
        %211 = vmatprep.subr.mxu0 0.0
        %212 = vmatpush1.msra.mxu0 0.0
        %213 = vmatprep.subr.mxu0 0.0
        %214 = vmatpush1.msra.mxu0 0.0
        %215 = vmatprep.subr.mxu0 0.0
        %216 = vmatpush1.msra.mxu0 0.0
        %217 = vmatprep.subr.mxu0 0.0
        %218 = vmatpush1.msra.mxu0 0.0
        %219 = vmatprep.subr.mxu0 0.0
        %220 = vmatpush1.msra.mxu0 0.0
        %221 = vmatprep.subr.mxu0 0.0
        %222 = vmatpush1.msra.mxu0 0.0
        %223 = vmatprep.subr.mxu0 0.0
        %224 = vmatpush1.msra.mxu0 0.0
        %225 = vmatprep.subr.mxu0 0.0
        %226 = vmatpush1.msra.mxu0 0.0
        %227 = vmatprep.subr.mxu0 0.0
        %228 = vmatpush1.msra.mxu0 0.0
        %229 = vmatprep.subr.mxu0 0.0
        %230 = vmatpush1.msra.mxu0 0.0
        %231 = vmatprep.subr.mxu0 0.0
        %232 = vmatpush1.msra.mxu0 0.0
        %233 = vmatprep.subr.mxu0 0.0
        %234 = vmatpush1.msra.mxu0 0.0
        %235 = vmatprep.subr.mxu0 0.0
        %236 = vmatpush1.msra.mxu0 0.0
        %237 = vmatprep.subr.mxu0 0.0
        %238 = vmatpush1.msra.mxu0 0.0
        %239 = vmatprep.subr.mxu0 0.0
        %240 = vmatpush1.msra.mxu0 0.0
        %241 = vmatprep.subr.mxu0 0.0
        %242 = vmatpush1.msra.mxu0 0.0
        %243 = vmatprep.subr.mxu0 0.0
        %244 = vmatpush1.msra.mxu0 0.0
        %245 = vmatprep.subr.mxu0 0.0
        %246 = vmatpush1.msra.mxu0 0.0
        %247 = vmatprep.subr.mxu0 0.0
        %248 = vmatpush1.msra.mxu0 0.0
        %249 = vmatprep.subr.mxu0 0.0
        %250 = vmatpush1.msra.mxu0 0.0
        %251 = vmatprep.subr.mxu0 0.0
        %252 = vmatpush1.msra.mxu0 0.0
        %253 = vmatprep.subr.mxu0 0.0
        %254 = vmatpush1.msra.mxu0 0.0
        %255 = vmatprep.subr.mxu0 0.0
        %256 = vmatpush1.msra.mxu0 0.0
        %257 = vmatprep.subr.mxu0 0.0
        %258 = vmatpush1.msra.mxu0 0.0
        %259 = vmatprep.subr.mxu0 0.0
        %260 = vmatpush1.msra.mxu0 0.0
        %261 = vmatprep.mubr.f32.mxu0 0.0
        %262 = vmatmul.mubr.f32.gmra.mrb[0].mxu0 %v188
        %v263 = vpop.f32.mrb[0].mxu0
        %v264 = vadd.f32 0.0, %v263
        %v265 = vpop.f32.mrb[0].mxu0
        %v266 = vadd.f32 0.0, %v265
        %267 = vdwg.mxu0
        %268 = vmatprep.subr.mxu0 0.0
        %269 = vmatpush1.msra.mxu0 %v195
        %270 = vmatprep.subr.mxu0 0.0
        %271 = vmatpush1.msra.mxu0 0.0
        %272 = vmatprep.subr.mxu0 0.0
        %273 = vmatpush1.msra.mxu0 0.0
        %274 = vmatprep.subr.mxu0 0.0
        %275 = vmatpush1.msra.mxu0 0.0
        %276 = vmatprep.subr.mxu0 0.0
        %277 = vmatpush1.msra.mxu0 0.0
        %278 = vmatprep.subr.mxu0 0.0
        %279 = vmatpush1.msra.mxu0 0.0
        %280 = vmatprep.subr.mxu0 0.0
        %281 = vmatpush1.msra.mxu0 0.0
        %282 = vmatprep.subr.mxu0 0.0
        %283 = vmatpush1.msra.mxu0 0.0
        %284 = vmatprep.subr.mxu0 0.0
        %285 = vmatpush1.msra.mxu0 0.0
        %286 = vmatprep.subr.mxu0 0.0
        %287 = vmatpush1.msra.mxu0 0.0
        %288 = vmatprep.subr.mxu0 0.0
        %289 = vmatpush1.msra.mxu0 0.0
        %290 = vmatprep.subr.mxu0 0.0
        %291 = vmatpush1.msra.mxu0 0.0
        %292 = vmatprep.subr.mxu0 0.0
        %293 = vmatpush1.msra.mxu0 0.0
        %294 = vmatprep.subr.mxu0 0.0
        %295 = vmatpush1.msra.mxu0 0.0
        %296 = vmatprep.subr.mxu0 0.0
        %297 = vmatpush1.msra.mxu0 0.0
        %298 = vmatprep.subr.mxu0 0.0
        %299 = vmatpush1.msra.mxu0 0.0
        %300 = vmatprep.subr.mxu0 0.0
        %301 = vmatpush1.msra.mxu0 0.0
        %302 = vmatprep.subr.mxu0 0.0
        %303 = vmatpush1.msra.mxu0 0.0
        %304 = vmatprep.subr.mxu0 0.0
        %305 = vmatpush1.msra.mxu0 0.0
        %306 = vmatprep.subr.mxu0 0.0
        %307 = vmatpush1.msra.mxu0 0.0
        %308 = vmatprep.subr.mxu0 0.0
        %309 = vmatpush1.msra.mxu0 0.0
        %310 = vmatprep.subr.mxu0 0.0
        %311 = vmatpush1.msra.mxu0 0.0
        %312 = vmatprep.subr.mxu0 0.0
        %313 = vmatpush1.msra.mxu0 0.0
        %314 = vmatprep.subr.mxu0 0.0
        %315 = vmatpush1.msra.mxu0 0.0
        %316 = vmatprep.subr.mxu0 0.0
        %317 = vmatpush1.msra.mxu0 0.0
        %318 = vmatprep.subr.mxu0 0.0
        %319 = vmatpush1.msra.mxu0 0.0
        %320 = vmatprep.subr.mxu0 0.0
        %321 = vmatpush1.msra.mxu0 0.0
        %322 = vmatprep.subr.mxu0 0.0
        %323 = vmatpush1.msra.mxu0 0.0
        %324 = vmatprep.subr.mxu0 0.0
        %325 = vmatpush1.msra.mxu0 0.0
        %326 = vmatprep.subr.mxu0 0.0
        %327 = vmatpush1.msra.mxu0 0.0
        %328 = vmatprep.subr.mxu0 0.0
        %329 = vmatpush1.msra.mxu0 0.0
        %330 = vmatprep.subr.mxu0 0.0
        %331 = vmatpush1.msra.mxu0 0.0
        %332 = vmatprep.mubr.f32.mxu0 0.0
        %333 = vmatmul.mubr.f32.gmra.mrb[0].mxu0 %v188
        %v334 = vpop.f32.mrb[0].mxu0
        %v335 = vadd.f32 0.0, %v334
        %v336 = vpop.f32.mrb[0].mxu0
        %337 = vdwg.mxu0
        %338 = vrot.lane.b32.xlu0 %v169, 109
        %v339 = vpop.permute.xlu0 %338
        %340 = vrot.lane.b32.xlu0 %v176, 109
        %v341 = vpop.permute.xlu0 %340
        %342 = vrot.lane.b32.xlu0 %v170, 109
        %v343 = vpop.permute.xlu0 %342
        %vm344 = vcmask 891904
        %v345 = vsel %vm344, %v339, %v341
        %v346 = vsel %vm344, %v341, %v343
        %v348 = vsel %vm186, %v171, 0
        %v350 = vsel %vm190, %v345, 0
        %v352 = vsel %vm190, %v346, 0
        %v354 = vsel %vm190, %v343, 0
        %356 = vmatprep.subr.mxu0 %v352
        %357 = vmatpush1.msra.mxu0 %v350
        %358 = vmatprep.subr.mxu0 0.0
        %359 = vmatpush1.msra.mxu0 0.0
        %360 = vmatprep.subr.mxu0 0.0
        %361 = vmatpush1.msra.mxu0 0.0
        %362 = vmatprep.subr.mxu0 0.0
        %363 = vmatpush1.msra.mxu0 0.0
        %364 = vmatprep.subr.mxu0 0.0
        %365 = vmatpush1.msra.mxu0 0.0
        %366 = vmatprep.subr.mxu0 0.0
        %367 = vmatpush1.msra.mxu0 0.0
        %368 = vmatprep.subr.mxu0 0.0
        %369 = vmatpush1.msra.mxu0 0.0
        %370 = vmatprep.subr.mxu0 0.0
        %371 = vmatpush1.msra.mxu0 0.0
        %372 = vmatprep.subr.mxu0 0.0
        %373 = vmatpush1.msra.mxu0 0.0
        %374 = vmatprep.subr.mxu0 0.0
        %375 = vmatpush1.msra.mxu0 0.0
        %376 = vmatprep.subr.mxu0 0.0
        %377 = vmatpush1.msra.mxu0 0.0
        %378 = vmatprep.subr.mxu0 0.0
        %379 = vmatpush1.msra.mxu0 0.0
        %380 = vmatprep.subr.mxu0 0.0
        %381 = vmatpush1.msra.mxu0 0.0
        %382 = vmatprep.subr.mxu0 0.0
        %383 = vmatpush1.msra.mxu0 0.0
        %384 = vmatprep.subr.mxu0 0.0
        %385 = vmatpush1.msra.mxu0 0.0
        %386 = vmatprep.subr.mxu0 0.0
        %387 = vmatpush1.msra.mxu0 0.0
        %388 = vmatprep.subr.mxu0 0.0
        %389 = vmatpush1.msra.mxu0 0.0
        %390 = vmatprep.subr.mxu0 0.0
        %391 = vmatpush1.msra.mxu0 0.0
        %392 = vmatprep.subr.mxu0 0.0
        %393 = vmatpush1.msra.mxu0 0.0
        %394 = vmatprep.subr.mxu0 0.0
        %395 = vmatpush1.msra.mxu0 0.0
        %396 = vmatprep.subr.mxu0 0.0
        %397 = vmatpush1.msra.mxu0 0.0
        %398 = vmatprep.subr.mxu0 0.0
        %399 = vmatpush1.msra.mxu0 0.0
        %400 = vmatprep.subr.mxu0 0.0
        %401 = vmatpush1.msra.mxu0 0.0
        %402 = vmatprep.subr.mxu0 0.0
        %403 = vmatpush1.msra.mxu0 0.0
        %404 = vmatprep.subr.mxu0 0.0
        %405 = vmatpush1.msra.mxu0 0.0
        %406 = vmatprep.subr.mxu0 0.0
        %407 = vmatpush1.msra.mxu0 0.0
        %408 = vmatprep.subr.mxu0 0.0
        %409 = vmatpush1.msra.mxu0 0.0
        %410 = vmatprep.subr.mxu0 0.0
        %411 = vmatpush1.msra.mxu0 0.0
        %412 = vmatprep.subr.mxu0 0.0
        %413 = vmatpush1.msra.mxu0 0.0
        %414 = vmatprep.subr.mxu0 0.0
        %415 = vmatpush1.msra.mxu0 0.0
        %416 = vmatprep.subr.mxu0 0.0
        %417 = vmatpush1.msra.mxu0 0.0
        %418 = vmatprep.subr.mxu0 0.0
        %419 = vmatpush1.msra.mxu0 0.0
        %420 = vmatprep.mubr.f32.mxu0 0.0
        %421 = vmatmul.mubr.f32.gmra.mrb[0].mxu0 %v348
        %v422 = vpop.f32.mrb[0].mxu0
        %v423 = vadd.f32 %v264, %v422
        %v424 = vpop.f32.mrb[0].mxu0
        %v425 = vadd.f32 %v266, %v424
        %426 = vdwg.mxu0
        %427 = vmatprep.subr.mxu0 0.0
        %428 = vmatpush1.msra.mxu0 %v354
        %429 = vmatprep.subr.mxu0 0.0
        %430 = vmatpush1.msra.mxu0 0.0
        %431 = vmatprep.subr.mxu0 0.0
        %432 = vmatpush1.msra.mxu0 0.0
        %433 = vmatprep.subr.mxu0 0.0
        %434 = vmatpush1.msra.mxu0 0.0
        %435 = vmatprep.subr.mxu0 0.0
        %436 = vmatpush1.msra.mxu0 0.0
        %437 = vmatprep.subr.mxu0 0.0
        %438 = vmatpush1.msra.mxu0 0.0
        %439 = vmatprep.subr.mxu0 0.0
        %440 = vmatpush1.msra.mxu0 0.0
        %441 = vmatprep.subr.mxu0 0.0
        %442 = vmatpush1.msra.mxu0 0.0
        %443 = vmatprep.subr.mxu0 0.0
        %444 = vmatpush1.msra.mxu0 0.0
        %445 = vmatprep.subr.mxu0 0.0
        %446 = vmatpush1.msra.mxu0 0.0
        %447 = vmatprep.subr.mxu0 0.0
        %448 = vmatpush1.msra.mxu0 0.0
        %449 = vmatprep.subr.mxu0 0.0
        %450 = vmatpush1.msra.mxu0 0.0
        %451 = vmatprep.subr.mxu0 0.0
        %452 = vmatpush1.msra.mxu0 0.0
        %453 = vmatprep.subr.mxu0 0.0
        %454 = vmatpush1.msra.mxu0 0.0
        %455 = vmatprep.subr.mxu0 0.0
        %456 = vmatpush1.msra.mxu0 0.0
        %457 = vmatprep.subr.mxu0 0.0
        %458 = vmatpush1.msra.mxu0 0.0
        %459 = vmatprep.subr.mxu0 0.0
        %460 = vmatpush1.msra.mxu0 0.0
        %461 = vmatprep.subr.mxu0 0.0
        %462 = vmatpush1.msra.mxu0 0.0
        %463 = vmatprep.subr.mxu0 0.0
        %464 = vmatpush1.msra.mxu0 0.0
        %465 = vmatprep.subr.mxu0 0.0
        %466 = vmatpush1.msra.mxu0 0.0
        %467 = vmatprep.subr.mxu0 0.0
        %468 = vmatpush1.msra.mxu0 0.0
        %469 = vmatprep.subr.mxu0 0.0
        %470 = vmatpush1.msra.mxu0 0.0
        %471 = vmatprep.subr.mxu0 0.0
        %472 = vmatpush1.msra.mxu0 0.0
        %473 = vmatprep.subr.mxu0 0.0
        %474 = vmatpush1.msra.mxu0 0.0
        %475 = vmatprep.subr.mxu0 0.0
        %476 = vmatpush1.msra.mxu0 0.0
        %477 = vmatprep.subr.mxu0 0.0
        %478 = vmatpush1.msra.mxu0 0.0
        %479 = vmatprep.subr.mxu0 0.0
        %480 = vmatpush1.msra.mxu0 0.0
        %481 = vmatprep.subr.mxu0 0.0
        %482 = vmatpush1.msra.mxu0 0.0
        %483 = vmatprep.subr.mxu0 0.0
        %484 = vmatpush1.msra.mxu0 0.0
        %485 = vmatprep.subr.mxu0 0.0
        %486 = vmatpush1.msra.mxu0 0.0
        %487 = vmatprep.subr.mxu0 0.0
        %488 = vmatpush1.msra.mxu0 0.0
        %489 = vmatprep.subr.mxu0 0.0
        %490 = vmatpush1.msra.mxu0 0.0
        %491 = vmatprep.mubr.f32.mxu0 0.0
        %492 = vmatmul.mubr.f32.gmra.mrb[0].mxu0 %v348
        %v493 = vpop.f32.mrb[0].mxu0
        %v494 = vadd.f32 %v335, %v493
        %v495 = vpop.f32.mrb[0].mxu0
        %496 = vdwg.mxu0
        %v497 = vld [vmem:[%s168] sm:$0xff]
        %v498 = vld [vmem:[%s168 + $0x8] sm:$0xf]
        %s499 = scalar_lea.vmem %s1, 16
        %v500 = vld [vmem:[%s499] sm:$0xff]
        %v503 = vcombine.high %v497, %v497
        %504 = vrot.lane.b32.xlu0 %v497, 92
        %v505 = vpop.permute.xlu0 %504
        %506 = vrot.lane.b32.xlu0 %v503, 92
        %v507 = vpop.permute.xlu0 %506
        %508 = vrot.lane.b32.xlu0 %v498, 92
        %v509 = vpop.permute.xlu0 %508
        %vm510 = vcmask 752640
        %v511 = vsel %vm510, %v505, %v507
        %v512 = vsel %vm510, %v507, %v509
        %v514 = vsel %vm186, %v500, 0
        %v516 = vsel %vm190, %v511, 0
        %v518 = vsel %vm190, %v512, 0
        %v520 = vsel %vm190, %v509, 0
        %522 = vmatprep.subr.mxu0 %v518
        %523 = vmatpush1.msra.mxu0 %v516
        %524 = vmatprep.subr.mxu0 0.0
        %525 = vmatpush1.msra.mxu0 0.0
        %526 = vmatprep.subr.mxu0 0.0
        %527 = vmatpush1.msra.mxu0 0.0
        %528 = vmatprep.subr.mxu0 0.0
        %529 = vmatpush1.msra.mxu0 0.0
        %530 = vmatprep.subr.mxu0 0.0
        %531 = vmatpush1.msra.mxu0 0.0
        %532 = vmatprep.subr.mxu0 0.0
        %533 = vmatpush1.msra.mxu0 0.0
        %534 = vmatprep.subr.mxu0 0.0
        %535 = vmatpush1.msra.mxu0 0.0
        %536 = vmatprep.subr.mxu0 0.0
        %537 = vmatpush1.msra.mxu0 0.0
        %538 = vmatprep.subr.mxu0 0.0
        %539 = vmatpush1.msra.mxu0 0.0
        %540 = vmatprep.subr.mxu0 0.0
        %541 = vmatpush1.msra.mxu0 0.0
        %542 = vmatprep.subr.mxu0 0.0
        %543 = vmatpush1.msra.mxu0 0.0
        %544 = vmatprep.subr.mxu0 0.0
        %545 = vmatpush1.msra.mxu0 0.0
        %546 = vmatprep.subr.mxu0 0.0
        %547 = vmatpush1.msra.mxu0 0.0
        %548 = vmatprep.subr.mxu0 0.0
        %549 = vmatpush1.msra.mxu0 0.0
        %550 = vmatprep.subr.mxu0 0.0
        %551 = vmatpush1.msra.mxu0 0.0
        %552 = vmatprep.subr.mxu0 0.0
        %553 = vmatpush1.msra.mxu0 0.0
        %554 = vmatprep.subr.mxu0 0.0
        %555 = vmatpush1.msra.mxu0 0.0
        %556 = vmatprep.subr.mxu0 0.0
        %557 = vmatpush1.msra.mxu0 0.0
        %558 = vmatprep.subr.mxu0 0.0
        %559 = vmatpush1.msra.mxu0 0.0
        %560 = vmatprep.subr.mxu0 0.0
        %561 = vmatpush1.msra.mxu0 0.0
        %562 = vmatprep.subr.mxu0 0.0
        %563 = vmatpush1.msra.mxu0 0.0
        %564 = vmatprep.subr.mxu0 0.0
        %565 = vmatpush1.msra.mxu0 0.0
        %566 = vmatprep.subr.mxu0 0.0
        %567 = vmatpush1.msra.mxu0 0.0
        %568 = vmatprep.subr.mxu0 0.0
        %569 = vmatpush1.msra.mxu0 0.0
        %570 = vmatprep.subr.mxu0 0.0
        %571 = vmatpush1.msra.mxu0 0.0
        %572 = vmatprep.subr.mxu0 0.0
        %573 = vmatpush1.msra.mxu0 0.0
        %574 = vmatprep.subr.mxu0 0.0
        %575 = vmatpush1.msra.mxu0 0.0
        %576 = vmatprep.subr.mxu0 0.0
        %577 = vmatpush1.msra.mxu0 0.0
        %578 = vmatprep.subr.mxu0 0.0
        %579 = vmatpush1.msra.mxu0 0.0
        %580 = vmatprep.subr.mxu0 0.0
        %581 = vmatpush1.msra.mxu0 0.0
        %582 = vmatprep.subr.mxu0 0.0
        %583 = vmatpush1.msra.mxu0 0.0
        %584 = vmatprep.subr.mxu0 0.0
        %585 = vmatpush1.msra.mxu0 0.0
        %586 = vmatprep.mubr.f32.mxu0 0.0
        %587 = vmatmul.mubr.f32.gmra.mrb[0].mxu0 %v514
        %v588 = vpop.f32.mrb[0].mxu0
        %v589 = vadd.f32 0.0, %v588
        %v590 = vpop.f32.mrb[0].mxu0
        %v591 = vadd.f32 0.0, %v590
        %592 = vdwg.mxu0
        %593 = vmatprep.subr.mxu0 0.0
        %594 = vmatpush1.msra.mxu0 %v520
        %595 = vmatprep.subr.mxu0 0.0
        %596 = vmatpush1.msra.mxu0 0.0
        %597 = vmatprep.subr.mxu0 0.0
        %598 = vmatpush1.msra.mxu0 0.0
        %599 = vmatprep.subr.mxu0 0.0
        %600 = vmatpush1.msra.mxu0 0.0
        %601 = vmatprep.subr.mxu0 0.0
        %602 = vmatpush1.msra.mxu0 0.0
        %603 = vmatprep.subr.mxu0 0.0
        %604 = vmatpush1.msra.mxu0 0.0
        %605 = vmatprep.subr.mxu0 0.0
        %606 = vmatpush1.msra.mxu0 0.0
        %607 = vmatprep.subr.mxu0 0.0
        %608 = vmatpush1.msra.mxu0 0.0
        %609 = vmatprep.subr.mxu0 0.0
        %610 = vmatpush1.msra.mxu0 0.0
        %611 = vmatprep.subr.mxu0 0.0
        %612 = vmatpush1.msra.mxu0 0.0
        %613 = vmatprep.subr.mxu0 0.0
        %614 = vmatpush1.msra.mxu0 0.0
        %615 = vmatprep.subr.mxu0 0.0
        %616 = vmatpush1.msra.mxu0 0.0
        %617 = vmatprep.subr.mxu0 0.0
        %618 = vmatpush1.msra.mxu0 0.0
        %619 = vmatprep.subr.mxu0 0.0
        %620 = vmatpush1.msra.mxu0 0.0
        %621 = vmatprep.subr.mxu0 0.0
        %622 = vmatpush1.msra.mxu0 0.0
        %623 = vmatprep.subr.mxu0 0.0
        %624 = vmatpush1.msra.mxu0 0.0
        %625 = vmatprep.subr.mxu0 0.0
        %626 = vmatpush1.msra.mxu0 0.0
        %627 = vmatprep.subr.mxu0 0.0
        %628 = vmatpush1.msra.mxu0 0.0
        %629 = vmatprep.subr.mxu0 0.0
        %630 = vmatpush1.msra.mxu0 0.0
        %631 = vmatprep.subr.mxu0 0.0
        %632 = vmatpush1.msra.mxu0 0.0
        %633 = vmatprep.subr.mxu0 0.0
        %634 = vmatpush1.msra.mxu0 0.0
        %635 = vmatprep.subr.mxu0 0.0
        %636 = vmatpush1.msra.mxu0 0.0
        %637 = vmatprep.subr.mxu0 0.0
        %638 = vmatpush1.msra.mxu0 0.0
        %639 = vmatprep.subr.mxu0 0.0
        %640 = vmatpush1.msra.mxu0 0.0
        %641 = vmatprep.subr.mxu0 0.0
        %642 = vmatpush1.msra.mxu0 0.0
        %643 = vmatprep.subr.mxu0 0.0
        %644 = vmatpush1.msra.mxu0 0.0
        %645 = vmatprep.subr.mxu0 0.0
        %646 = vmatpush1.msra.mxu0 0.0
        %647 = vmatprep.subr.mxu0 0.0
        %648 = vmatpush1.msra.mxu0 0.0
        %649 = vmatprep.subr.mxu0 0.0
        %650 = vmatpush1.msra.mxu0 0.0
        %651 = vmatprep.subr.mxu0 0.0
        %652 = vmatpush1.msra.mxu0 0.0
        %653 = vmatprep.subr.mxu0 0.0
        %654 = vmatpush1.msra.mxu0 0.0
        %655 = vmatprep.subr.mxu0 0.0
        %656 = vmatpush1.msra.mxu0 0.0
        %657 = vmatprep.mubr.f32.mxu0 0.0
        %658 = vmatmul.mubr.f32.gmra.mrb[0].mxu0 %v514
        %v659 = vpop.f32.mrb[0].mxu0
        %v660 = vadd.f32 0.0, %v659
        %v661 = vpop.f32.mrb[0].mxu0
        %662 = vdwg.mxu0
        %v663 = vadd.f32 %v423, %v589
        %v664 = vadd.f32 %v425, %v591
        %v665 = vadd.f32 %v494, %v660
        %v666 = vld [vmem:[%s168] sm:$0xff]
        %v667 = vld [vmem:[%s168 + $0x8] sm:$0xf]
        %s668 = scalar_lea.vmem %s1, 24
        %v669 = vld [vmem:[%s668] sm:$0xff]
        %v672 = vcombine.high %v666, %v666
        %673 = vrot.lane.b32.xlu0 %v666, 91
        %v674 = vpop.permute.xlu0 %673
        %675 = vrot.lane.b32.xlu0 %v672, 91
        %v676 = vpop.permute.xlu0 %675
        %677 = vrot.lane.b32.xlu0 %v667, 91
        %v678 = vpop.permute.xlu0 %677
        %vm679 = vcmask 744448
        %v680 = vsel %vm679, %v674, %v676
        %v681 = vsel %vm679, %v676, %v678
        %v683 = vsel %vm186, %v669, 0
        %v685 = vsel %vm190, %v680, 0
        %v687 = vsel %vm190, %v681, 0
        %v689 = vsel %vm190, %v678, 0
        %691 = vmatprep.subr.mxu0 %v687
        %692 = vmatpush1.msra.mxu0 %v685
        %693 = vmatprep.subr.mxu0 0.0
        %694 = vmatpush1.msra.mxu0 0.0
        %695 = vmatprep.subr.mxu0 0.0
        %696 = vmatpush1.msra.mxu0 0.0
        %697 = vmatprep.subr.mxu0 0.0
        %698 = vmatpush1.msra.mxu0 0.0
        %699 = vmatprep.subr.mxu0 0.0
        %700 = vmatpush1.msra.mxu0 0.0
        %701 = vmatprep.subr.mxu0 0.0
        %702 = vmatpush1.msra.mxu0 0.0
        %703 = vmatprep.subr.mxu0 0.0
        %704 = vmatpush1.msra.mxu0 0.0
        %705 = vmatprep.subr.mxu0 0.0
        %706 = vmatpush1.msra.mxu0 0.0
        %707 = vmatprep.subr.mxu0 0.0
        %708 = vmatpush1.msra.mxu0 0.0
        %709 = vmatprep.subr.mxu0 0.0
        %710 = vmatpush1.msra.mxu0 0.0
        %711 = vmatprep.subr.mxu0 0.0
        %712 = vmatpush1.msra.mxu0 0.0
        %713 = vmatprep.subr.mxu0 0.0
        %714 = vmatpush1.msra.mxu0 0.0
        %715 = vmatprep.subr.mxu0 0.0
        %716 = vmatpush1.msra.mxu0 0.0
        %717 = vmatprep.subr.mxu0 0.0
        %718 = vmatpush1.msra.mxu0 0.0
        %719 = vmatprep.subr.mxu0 0.0
        %720 = vmatpush1.msra.mxu0 0.0
        %721 = vmatprep.subr.mxu0 0.0
        %722 = vmatpush1.msra.mxu0 0.0
        %723 = vmatprep.subr.mxu0 0.0
        %724 = vmatpush1.msra.mxu0 0.0
        %725 = vmatprep.subr.mxu0 0.0
        %726 = vmatpush1.msra.mxu0 0.0
        %727 = vmatprep.subr.mxu0 0.0
        %728 = vmatpush1.msra.mxu0 0.0
        %729 = vmatprep.subr.mxu0 0.0
        %730 = vmatpush1.msra.mxu0 0.0
        %731 = vmatprep.subr.mxu0 0.0
        %732 = vmatpush1.msra.mxu0 0.0
        %733 = vmatprep.subr.mxu0 0.0
        %734 = vmatpush1.msra.mxu0 0.0
        %735 = vmatprep.subr.mxu0 0.0
        %736 = vmatpush1.msra.mxu0 0.0
        %737 = vmatprep.subr.mxu0 0.0
        %738 = vmatpush1.msra.mxu0 0.0
        %739 = vmatprep.subr.mxu0 0.0
        %740 = vmatpush1.msra.mxu0 0.0
        %741 = vmatprep.subr.mxu0 0.0
        %742 = vmatpush1.msra.mxu0 0.0
        %743 = vmatprep.subr.mxu0 0.0
        %744 = vmatpush1.msra.mxu0 0.0
        %745 = vmatprep.subr.mxu0 0.0
        %746 = vmatpush1.msra.mxu0 0.0
        %747 = vmatprep.subr.mxu0 0.0
        %748 = vmatpush1.msra.mxu0 0.0
        %749 = vmatprep.subr.mxu0 0.0
        %750 = vmatpush1.msra.mxu0 0.0
        %751 = vmatprep.subr.mxu0 0.0
        %752 = vmatpush1.msra.mxu0 0.0
        %753 = vmatprep.subr.mxu0 0.0
        %754 = vmatpush1.msra.mxu0 0.0
        %755 = vmatprep.mubr.f32.mxu0 0.0
        %756 = vmatmul.mubr.f32.gmra.mrb[0].mxu0 %v683
        %v757 = vpop.f32.mrb[0].mxu0
        %v758 = vadd.f32 0.0, %v757
        %v759 = vpop.f32.mrb[0].mxu0
        %v760 = vadd.f32 0.0, %v759
        %761 = vdwg.mxu0
        %762 = vmatprep.subr.mxu0 0.0
        %763 = vmatpush1.msra.mxu0 %v689
        %764 = vmatprep.subr.mxu0 0.0
        %765 = vmatpush1.msra.mxu0 0.0
        %766 = vmatprep.subr.mxu0 0.0
        %767 = vmatpush1.msra.mxu0 0.0
        %768 = vmatprep.subr.mxu0 0.0
        %769 = vmatpush1.msra.mxu0 0.0
        %770 = vmatprep.subr.mxu0 0.0
        %771 = vmatpush1.msra.mxu0 0.0
        %772 = vmatprep.subr.mxu0 0.0
        %773 = vmatpush1.msra.mxu0 0.0
        %774 = vmatprep.subr.mxu0 0.0
        %775 = vmatpush1.msra.mxu0 0.0
        %776 = vmatprep.subr.mxu0 0.0
        %777 = vmatpush1.msra.mxu0 0.0
        %778 = vmatprep.subr.mxu0 0.0
        %779 = vmatpush1.msra.mxu0 0.0
        %780 = vmatprep.subr.mxu0 0.0
        %781 = vmatpush1.msra.mxu0 0.0
        %782 = vmatprep.subr.mxu0 0.0
        %783 = vmatpush1.msra.mxu0 0.0
        %784 = vmatprep.subr.mxu0 0.0
        %785 = vmatpush1.msra.mxu0 0.0
        %786 = vmatprep.subr.mxu0 0.0
        %787 = vmatpush1.msra.mxu0 0.0
        %788 = vmatprep.subr.mxu0 0.0
        %789 = vmatpush1.msra.mxu0 0.0
        %790 = vmatprep.subr.mxu0 0.0
        %791 = vmatpush1.msra.mxu0 0.0
        %792 = vmatprep.subr.mxu0 0.0
        %793 = vmatpush1.msra.mxu0 0.0
        %794 = vmatprep.subr.mxu0 0.0
        %795 = vmatpush1.msra.mxu0 0.0
        %796 = vmatprep.subr.mxu0 0.0
        %797 = vmatpush1.msra.mxu0 0.0
        %798 = vmatprep.subr.mxu0 0.0
        %799 = vmatpush1.msra.mxu0 0.0
        %800 = vmatprep.subr.mxu0 0.0
        %801 = vmatpush1.msra.mxu0 0.0
        %802 = vmatprep.subr.mxu0 0.0
        %803 = vmatpush1.msra.mxu0 0.0
        %804 = vmatprep.subr.mxu0 0.0
        %805 = vmatpush1.msra.mxu0 0.0
        %806 = vmatprep.subr.mxu0 0.0
        %807 = vmatpush1.msra.mxu0 0.0
        %808 = vmatprep.subr.mxu0 0.0
        %809 = vmatpush1.msra.mxu0 0.0
        %810 = vmatprep.subr.mxu0 0.0
        %811 = vmatpush1.msra.mxu0 0.0
        %812 = vmatprep.subr.mxu0 0.0
        %813 = vmatpush1.msra.mxu0 0.0
        %814 = vmatprep.subr.mxu0 0.0
        %815 = vmatpush1.msra.mxu0 0.0
        %816 = vmatprep.subr.mxu0 0.0
        %817 = vmatpush1.msra.mxu0 0.0
        %818 = vmatprep.subr.mxu0 0.0
        %819 = vmatpush1.msra.mxu0 0.0
        %820 = vmatprep.subr.mxu0 0.0
        %821 = vmatpush1.msra.mxu0 0.0
        %822 = vmatprep.subr.mxu0 0.0
        %823 = vmatpush1.msra.mxu0 0.0
        %824 = vmatprep.subr.mxu0 0.0
        %825 = vmatpush1.msra.mxu0 0.0
        %826 = vmatprep.mubr.f32.mxu0 0.0
        %827 = vmatmul.mubr.f32.gmra.mrb[0].mxu0 %v683
        %v828 = vpop.f32.mrb[0].mxu0
        %v829 = vadd.f32 0.0, %v828
        %v830 = vpop.f32.mrb[0].mxu0
        %831 = vdwg.mxu0
        %v832 = vadd.f32 %v663, %v758
        %v833 = vadd.f32 %v664, %v760
        %v834 = vadd.f32 %v665, %v829
        %v835 = vld [vmem:[%s168] sm:$0xff]
        %v836 = vld [vmem:[%s168 + $0x8] sm:$0xf]
        %s837 = scalar_lea.vmem %s1, 32
        %v838 = vld [vmem:[%s837] sm:$0xff]
        %v841 = vcombine.high %v835, %v835
        %842 = vrot.lane.b32.xlu0 %v835, 90
        %v843 = vpop.permute.xlu0 %842
        %844 = vrot.lane.b32.xlu0 %v841, 90
        %v845 = vpop.permute.xlu0 %844
        %846 = vrot.lane.b32.xlu0 %v836, 90
        %v847 = vpop.permute.xlu0 %846
        %vm848 = vcmask 736256
        %v849 = vsel %vm848, %v843, %v845
        %v850 = vsel %vm848, %v845, %v847
        %v852 = vsel %vm186, %v838, 0
        %v854 = vsel %vm190, %v849, 0
        %v856 = vsel %vm190, %v850, 0
        %v858 = vsel %vm190, %v847, 0
        %860 = vmatprep.subr.mxu0 %v856
        %861 = vmatpush1.msra.mxu0 %v854
        %862 = vmatprep.subr.mxu0 0.0
        %863 = vmatpush1.msra.mxu0 0.0
        %864 = vmatprep.subr.mxu0 0.0
        %865 = vmatpush1.msra.mxu0 0.0
        %866 = vmatprep.subr.mxu0 0.0
        %867 = vmatpush1.msra.mxu0 0.0
        %868 = vmatprep.subr.mxu0 0.0
        %869 = vmatpush1.msra.mxu0 0.0
        %870 = vmatprep.subr.mxu0 0.0
        %871 = vmatpush1.msra.mxu0 0.0
        %872 = vmatprep.subr.mxu0 0.0
        %873 = vmatpush1.msra.mxu0 0.0
        %874 = vmatprep.subr.mxu0 0.0
        %875 = vmatpush1.msra.mxu0 0.0
        %876 = vmatprep.subr.mxu0 0.0
        %877 = vmatpush1.msra.mxu0 0.0
        %878 = vmatprep.subr.mxu0 0.0
        %879 = vmatpush1.msra.mxu0 0.0
        %880 = vmatprep.subr.mxu0 0.0
        %881 = vmatpush1.msra.mxu0 0.0
        %882 = vmatprep.subr.mxu0 0.0
        %883 = vmatpush1.msra.mxu0 0.0
        %884 = vmatprep.subr.mxu0 0.0
        %885 = vmatpush1.msra.mxu0 0.0
        %886 = vmatprep.subr.mxu0 0.0
        %887 = vmatpush1.msra.mxu0 0.0
        %888 = vmatprep.subr.mxu0 0.0
        %889 = vmatpush1.msra.mxu0 0.0
        %890 = vmatprep.subr.mxu0 0.0
        %891 = vmatpush1.msra.mxu0 0.0
        %892 = vmatprep.subr.mxu0 0.0
        %893 = vmatpush1.msra.mxu0 0.0
        %894 = vmatprep.subr.mxu0 0.0
        %895 = vmatpush1.msra.mxu0 0.0
        %896 = vmatprep.subr.mxu0 0.0
        %897 = vmatpush1.msra.mxu0 0.0
        %898 = vmatprep.subr.mxu0 0.0
        %899 = vmatpush1.msra.mxu0 0.0
        %900 = vmatprep.subr.mxu0 0.0
        %901 = vmatpush1.msra.mxu0 0.0
        %902 = vmatprep.subr.mxu0 0.0
        %903 = vmatpush1.msra.mxu0 0.0
        %904 = vmatprep.subr.mxu0 0.0
        %905 = vmatpush1.msra.mxu0 0.0
        %906 = vmatprep.subr.mxu0 0.0
        %907 = vmatpush1.msra.mxu0 0.0
        %908 = vmatprep.subr.mxu0 0.0
        %909 = vmatpush1.msra.mxu0 0.0
        %910 = vmatprep.subr.mxu0 0.0
        %911 = vmatpush1.msra.mxu0 0.0
        %912 = vmatprep.subr.mxu0 0.0
        %913 = vmatpush1.msra.mxu0 0.0
        %914 = vmatprep.subr.mxu0 0.0
        %915 = vmatpush1.msra.mxu0 0.0
        %916 = vmatprep.subr.mxu0 0.0
        %917 = vmatpush1.msra.mxu0 0.0
        %918 = vmatprep.subr.mxu0 0.0
        %919 = vmatpush1.msra.mxu0 0.0
        %920 = vmatprep.subr.mxu0 0.0
        %921 = vmatpush1.msra.mxu0 0.0
        %922 = vmatprep.subr.mxu0 0.0
        %923 = vmatpush1.msra.mxu0 0.0
        %924 = vmatprep.mubr.f32.mxu0 0.0
        %925 = vmatmul.mubr.f32.gmra.mrb[0].mxu0 %v852
        %v926 = vpop.f32.mrb[0].mxu0
        %v927 = vadd.f32 0.0, %v926
        %v928 = vpop.f32.mrb[0].mxu0
        %v929 = vadd.f32 0.0, %v928
        %930 = vdwg.mxu0
        %931 = vmatprep.subr.mxu0 0.0
        %932 = vmatpush1.msra.mxu0 %v858
        %933 = vmatprep.subr.mxu0 0.0
        %934 = vmatpush1.msra.mxu0 0.0
        %935 = vmatprep.subr.mxu0 0.0
        %936 = vmatpush1.msra.mxu0 0.0
        %937 = vmatprep.subr.mxu0 0.0
        %938 = vmatpush1.msra.mxu0 0.0
        %939 = vmatprep.subr.mxu0 0.0
        %940 = vmatpush1.msra.mxu0 0.0
        %941 = vmatprep.subr.mxu0 0.0
        %942 = vmatpush1.msra.mxu0 0.0
        %943 = vmatprep.subr.mxu0 0.0
        %944 = vmatpush1.msra.mxu0 0.0
        %945 = vmatprep.subr.mxu0 0.0
        %946 = vmatpush1.msra.mxu0 0.0
        %947 = vmatprep.subr.mxu0 0.0
        %948 = vmatpush1.msra.mxu0 0.0
        %949 = vmatprep.subr.mxu0 0.0
        %950 = vmatpush1.msra.mxu0 0.0
        %951 = vmatprep.subr.mxu0 0.0
        %952 = vmatpush1.msra.mxu0 0.0
        %953 = vmatprep.subr.mxu0 0.0
        %954 = vmatpush1.msra.mxu0 0.0
        %955 = vmatprep.subr.mxu0 0.0
        %956 = vmatpush1.msra.mxu0 0.0
        %957 = vmatprep.subr.mxu0 0.0
        %958 = vmatpush1.msra.mxu0 0.0
        %959 = vmatprep.subr.mxu0 0.0
        %960 = vmatpush1.msra.mxu0 0.0
        %961 = vmatprep.subr.mxu0 0.0
        %962 = vmatpush1.msra.mxu0 0.0
        %963 = vmatprep.subr.mxu0 0.0
        %964 = vmatpush1.msra.mxu0 0.0
        %965 = vmatprep.subr.mxu0 0.0
        %966 = vmatpush1.msra.mxu0 0.0
        %967 = vmatprep.subr.mxu0 0.0
        %968 = vmatpush1.msra.mxu0 0.0
        %969 = vmatprep.subr.mxu0 0.0
        %970 = vmatpush1.msra.mxu0 0.0
        %971 = vmatprep.subr.mxu0 0.0
        %972 = vmatpush1.msra.mxu0 0.0
        %973 = vmatprep.subr.mxu0 0.0
        %974 = vmatpush1.msra.mxu0 0.0
        %975 = vmatprep.subr.mxu0 0.0
        %976 = vmatpush1.msra.mxu0 0.0
        %977 = vmatprep.subr.mxu0 0.0
        %978 = vmatpush1.msra.mxu0 0.0
        %979 = vmatprep.subr.mxu0 0.0
        %980 = vmatpush1.msra.mxu0 0.0
        %981 = vmatprep.subr.mxu0 0.0
        %982 = vmatpush1.msra.mxu0 0.0
        %983 = vmatprep.subr.mxu0 0.0
        %984 = vmatpush1.msra.mxu0 0.0
        %985 = vmatprep.subr.mxu0 0.0
        %986 = vmatpush1.msra.mxu0 0.0
        %987 = vmatprep.subr.mxu0 0.0
        %988 = vmatpush1.msra.mxu0 0.0
        %989 = vmatprep.subr.mxu0 0.0
        %990 = vmatpush1.msra.mxu0 0.0
        %991 = vmatprep.subr.mxu0 0.0
        %992 = vmatpush1.msra.mxu0 0.0
        %993 = vmatprep.subr.mxu0 0.0
        %994 = vmatpush1.msra.mxu0 0.0
        %995 = vmatprep.mubr.f32.mxu0 0.0
        %996 = vmatmul.mubr.f32.gmra.mrb[0].mxu0 %v852
        %v997 = vpop.f32.mrb[0].mxu0
        %v998 = vadd.f32 0.0, %v997
        %v999 = vpop.f32.mrb[0].mxu0
        %1000 = vdwg.mxu0
        %v1001 = vadd.f32 %v832, %v927
        %v1002 = vadd.f32 %v833, %v929
        %v1003 = vadd.f32 %v834, %v998
        %v1004 = vld [vmem:[%s2] sm:$0xff]
        %1006 = vset.pattern.permute.xlu0 0
        %1007 = vperm.xlu0 %1006, %v1004
        %v1008 = vpop.permute.xlu0 %1007
        %v1010 = vadd.f32 %v1001, %v1008
        %v1011 = vadd.f32 %v1002, %v1008
        %v1012 = vadd.f32 %v1003, %v1008
        %1013 = vst [vmem:[%s163] sm:$0xff] %v1010
        %1014 = vst [vmem:[%s163 + $0x8] sm:$0xff] %v1011
        %vm1015 = vcmask 261120
        %1016 = vst.msk [vmem:[%s163 + $0x10] sm:$0xff] %vm1015, %v1012
        %s1017 = sand.u32 %s93, 1
        %s1018 = scalar_lea.sflag [#allocation3], %s1017
        %s1019 = sand.u32 %s93, 1
        %s1020 = smul.addr %s1019, 24
        %s1021 = scalar_lea.vmem [#allocation2], %s1020
        // Predicated region
        $region33: #{tpu_custom_call.1} parent=31 // pred_check
          %p1022 = pneg %p103
        $region34: #{tpu_custom_call.1} parent=31 // pred_check_branch
          %1024 = sbr.rel (%p1022) target = $region36
        $region35: #{tpu_custom_call.1} parent=31 // pred_region
          %s1026 = ssub.s32 384, 384
          %1027 = vsyncadd %s1018, %s1026
          %s1028 = smul.addr %s17, 3
          %s1029 = smul.addr %s1028, 128
          %s1030 = scalar_lea.hbm %s3, %s1029
          %s1032 = sshll.u32 %s1021, 4
          %s1033 = int_to_ptr.vmem [resolvable:$true] %s1032
          %1035 = dma.vmem_to_hbm [thread:$0]  %s1033, 384, %s1030, %s1018
        $region36: #{tpu_custom_call.1} parent=31 // pred_fallthru
          _
      $region32: #{tpu_custom_call.1} parent=5 // pred_fallthru
        _
      %p1036 = scmp.le.s32.totalorder 2, %s12
      // Predicated region
      $region37: #{tpu_custom_call.1} parent=5 // pred_check
        %p1037 = pneg %p1036
      $region38: #{tpu_custom_call.1} parent=5 // pred_check_branch
        %1039 = sbr.rel (%p1037) target = $region40
      $region39: #{tpu_custom_call.1} parent=5 // pred_region
        %s1040 = ssub.s32 %s12, 2
        // Predicated region
        $region41: #{tpu_custom_call.1} parent=39 // pred_check
          %p1041 = pneg %p109
        $region42: #{tpu_custom_call.1} parent=39 // pred_check_branch
          %1043 = sbr.rel (%p1041) target = $region44
        $region43: #{tpu_custom_call.1} parent=39 // pred_region
          %s1044 = sand.u32 %s94, 1
          %s1045 = scalar_lea.sflag [#allocation3], %s1044
          %s1046 = sand.u32 %s94, 1
          %s1047 = smul.addr %s1046, 24
          %s1048 = scalar_lea.vmem [#allocation2], %s1047
          %1049 = dma.done %s1045, 384
        $region44: #{tpu_custom_call.1} parent=39 // pred_fallthru
          _
      $region40: #{tpu_custom_call.1} parent=5 // pred_fallthru
        _
    $region6: #{tpu_custom_call.1} parent=1 // loop_footer
      %s16 = sadd.s32 1, %s12
    $region7: #{tpu_custom_call.1} parent=1 // loop_footer_branch
      %11 = sbr.rel target = $region3
    $region8: #{tpu_custom_call.1} parent=1 // loop_exit
      _
    %1050 = vsyncpa [#allocation3], 1
    %s1051 = scalar_lea.sflag [#allocation3], 1
    %1052 = vsyncpa %s1051, 1

</llo_original>
